<compile_context>
chip_gen: v7x
topology: tpu7x:2x2x1
jax: 0.10.0
libtpu: 0.0.40
codegen_flags: <defaults>
</compile_context>

<pallas_src>
import functools

import jax
import jax.numpy as jnp
from jax.experimental import pallas as pl
from jax.experimental.pallas import tpu as pltpu


def _round_up(a, b):
    return (a + b - 1) // b * b


def _vmem_capacity_bytes():
    try:
        return int(pltpu.get_tpu_info().vmem_capacity_bytes)
    except Exception:
        # Conservative fallback = smallest generation (v7x: 64 MiB per core).
        return 64 * 1024 * 1024


def _pick_tiles(n, d, itemsize, x_buf_budget, block_rows):
    """Pick (tm, tk) so one X pipeline buffer (tm*tk*itemsize) fits budget."""
    tm = min(block_rows, _round_up(n, 8))
    if tm * d * itemsize <= x_buf_budget:
        tk = d                                    # full feature dim per block
    else:
        rows_fit = (x_buf_budget // (d * itemsize)) // 8 * 8
        if rows_fit >= 8:
            tm, tk = min(tm, rows_fit), d         # shrink rows, keep full D
        else:                                     # D too large even for 8 rows
            tm = min(tm, 256)
            tk = max(128, (x_buf_budget // (tm * itemsize)) // 128 * 128)
    tm = min(tm, n)   # tiny N -> single block equal to the full dim (allowed)
    return tm, tk


def _lasso_kernel(x_ref, w_ref, b_ref, o_ref, acc_ref):
    # x_ref  : (TM, TK) tile of X, native dtype (f32 or bf16)
    # w_ref  : (TK, 1)  weight column slice, f32
    # b_ref  : (1, 1)   bias scalar in SMEM
    # o_ref  : (TM, 1)  output tile (f32), resident across the K axis
    # acc_ref: (TM, 1)  f32 accumulator scratch
    k = pl.program_id(1)

    @pl.when(k == 0)
    def _():
        acc_ref[...] = jnp.zeros_like(acc_ref)

    x = x_ref[...]
    w = w_ref[...].astype(x.dtype)        # MXU-native dtype (bf16 stays bf16)
    acc_ref[...] += jnp.dot(x, w, preferred_element_type=jnp.float32)

    @pl.when(k == pl.num_programs(1) - 1)
    def _():
        o_ref[...] = (acc_ref[...] + b_ref[0, 0]).astype(o_ref.dtype)


@functools.partial(jax.jit, static_argnames=("block_rows",))
def lasso_forward(x, w, bias, *, block_rows=1024):
    """Pallas implementation of PytorchLasso.forward / predict."""
    n, d = x.shape
    itemsize = jnp.dtype(x.dtype).itemsize

    vmem_cap = _vmem_capacity_bytes()
    # Two pipeline buffers for X take ~60% of VMEM; everything else is tiny.
    x_buf_budget = (3 * vmem_cap) // 10
    tm, tk = _pick_tiles(n, d, itemsize, x_buf_budget, block_rows)

    # Zero-pad D only if the contraction has to be tiled and does not divide.
    d_pad = d if tk == d else _round_up(d, tk)
    if d_pad != d:
        x = jnp.pad(x, ((0, 0), (0, d_pad - d)))
    w_col = jnp.pad(w.astype(jnp.float32), (0, d_pad - d)).reshape(d_pad, 1)
    b_smem = jnp.asarray(bias, jnp.float32).reshape(1, 1)

    grid_m = pl.cdiv(n, tm)
    grid_k = d_pad // tk

    out = pl.pallas_call(
        _lasso_kernel,
        out_shape=jax.ShapeDtypeStruct((n, 1), jnp.float32),
        grid_spec=pltpu.PrefetchScalarGridSpec(
            num_scalar_prefetch=0,
            grid=(grid_m, grid_k),
            in_specs=[
                pl.BlockSpec((tm, tk), lambda i, k: (i, k)),   # X tile
                pl.BlockSpec((tk, 1), lambda i, k: (k, 0)),    # w column slice
                pl.BlockSpec(memory_space=pltpu.SMEM),         # bias scalar
            ],
            out_specs=pl.BlockSpec((tm, 1), lambda i, k: (i, 0)),
            scratch_shapes=[pltpu.VMEM((tm, 1), jnp.float32)],
        ),
        compiler_params=pltpu.CompilerParams(
            dimension_semantics=("parallel", "arbitrary"),
            vmem_limit_bytes=(vmem_cap * 3) // 4,
        ),
        cost_estimate=pl.CostEstimate(
            flops=2 * n * d,
            transcendentals=0,
            bytes_accessed=n * d * itemsize + n * 4 + d * 4 + 4,
        ),
    )(x, w_col, b_smem)

    return out[:, 0]                     # (N,), matches torch.mv(X, w) + bias


if __name__ == "__main__":
    # Small shapes consistent with the module: X is (batch, dim).
    batch, dim = 200, 96

    key = jax.random.PRNGKey(0)
    kx, kw, kb = jax.random.split(key, 3)

    x = jax.random.normal(kx, (batch, dim), dtype=jnp.float32)
    # Module __init__ uses 0 * randn (zeros); use deterministic non-zero
    # values of the same shapes so the kernel path is exercised.
    w = 0.1 * jax.random.normal(kw, (dim,), dtype=jnp.float32)
    bias = 0.1 * jax.random.normal(kb, (1,), dtype=jnp.float32)

    # f32 path with a small row tile so the multi-step grid and the partial
    # last block (200 % 64 != 0) are exercised.
    y = jax.block_until_ready(lasso_forward(x, w, bias, block_rows=64))
    y_ref = jnp.dot(x, w, precision=jax.lax.Precision.HIGHEST) + bias[0]
    assert y.shape == (batch,)
    assert jnp.allclose(y, y_ref, atol=1e-2, rtol=1e-2)

    # bf16 X streamed in its native dtype (f32 accumulation inside the kernel).
    x_bf16 = x.astype(jnp.bfloat16)
    y_bf = jax.block_until_ready(lasso_forward(x_bf16, w, bias))
    y_bf_ref = (
        jnp.dot(x_bf16.astype(jnp.float32), w,
                precision=jax.lax.Precision.HIGHEST) + bias[0]
    )
    assert y_bf.shape == (batch,)
    assert jnp.allclose(y_bf, y_bf_ref, atol=5e-2, rtol=5e-2)

    print("KERNEL_OK")
</pallas_src>

<mosaic_0001>
module attributes {stable_mosaic.version = 11 : i64} {
  func.func @_lasso_kernel(%arg0: i32, %arg1: i32, %arg2: memref<64x96xf32, #tpu.memory_space<vmem>>, %arg3: memref<96x1xf32, #tpu.memory_space<vmem>>, %arg4: memref<1x1xf32, #tpu.memory_space<smem>>, %arg5: memref<64x1xf32, #tpu.memory_space<vmem>>, %arg6: memref<64x1xf32, #tpu.memory_space<vmem>>) attributes {dimension_semantics = [#tpu.dimension_semantics<parallel>, #tpu.dimension_semantics<arbitrary>], iteration_bounds = array<i64: 4, 1>, scalar_prefetch = 0 : i64, scratch_operands = 1 : i64, tpu.core_type = #tpu.core_type<tc>, window_params = [{transform_indices = @transform_0, window_bounds = array<i64: 64, 96>}, {transform_indices = @transform_1, window_bounds = array<i64: 96, 1>}, {transform_indices = @transform_2, window_bounds = array<i64: 1, 1>}, {transform_indices = @transform_3, window_bounds = array<i64: 64, 1>}]} {
    %c0_i32 = arith.constant 0 : i32
    %0 = arith.cmpi eq, %arg1, %c0_i32 : i32
    %1 = arith.extui %0 : i1 to i32
    %c0_i32_0 = arith.constant 0 : i32
    %2 = arith.cmpi ne, %1, %c0_i32_0 : i32
    scf.if %2 {
      %cst_10 = arith.constant 0.000000e+00 : f32
      %12 = vector.broadcast %cst_10 : f32 to vector<64x1xf32>
      %c0_11 = arith.constant 0 : index
      %c0_12 = arith.constant 0 : index
      %13 = vector.load %arg6[%c0_11, %c0_12] : memref<64x1xf32, #tpu.memory_space<vmem>>, vector<64x1xf32>
      tpu.vector_store %arg6[%c0_11, %c0_12], %12 {strides = array<i32>} : memref<64x1xf32, #tpu.memory_space<vmem>>, vector<64x1xf32>,
    } else {
    }
    %c0 = arith.constant 0 : index
    %c0_1 = arith.constant 0 : index
    %3 = vector.load %arg2[%c0, %c0_1] : memref<64x96xf32, #tpu.memory_space<vmem>>, vector<64x96xf32>
    %c0_2 = arith.constant 0 : index
    %c0_3 = arith.constant 0 : index
    %4 = vector.load %arg3[%c0_2, %c0_3] : memref<96x1xf32, #tpu.memory_space<vmem>>, vector<96x1xf32>
    %c0_4 = arith.constant 0 : index
    %c0_5 = arith.constant 0 : index
    %5 = vector.load %arg6[%c0_4, %c0_5] : memref<64x1xf32, #tpu.memory_space<vmem>>, vector<64x1xf32>
    %cst = arith.constant dense<0.000000e+00> : vector<64x1xf32>
    %6 = tpu.matmul %3, %4, %cst {dimension_numbers = #tpu.dot_dimension_numbers<[1], [0], [0], [1], [0, 0, 1, 1], [], []>} : vector<64x96xf32>, vector<96x1xf32>, vector<64x1xf32> -> vector<64x1xf32>
    %7 = arith.addf %5, %6 : vector<64x1xf32>
    %c0_6 = arith.constant 0 : index
    %c0_7 = arith.constant 0 : index
    %8 = vector.load %arg6[%c0_6, %c0_7] : memref<64x1xf32, #tpu.memory_space<vmem>>, vector<64x1xf32>
    tpu.vector_store %arg6[%c0_6, %c0_7], %7 {strides = array<i32>} : memref<64x1xf32, #tpu.memory_space<vmem>>, vector<64x1xf32>,
    %c0_i32_8 = arith.constant 0 : i32
    %9 = arith.cmpi eq, %arg1, %c0_i32_8 : i32
    %10 = arith.extui %9 : i1 to i32
    %c0_i32_9 = arith.constant 0 : i32
    %11 = arith.cmpi ne, %10, %c0_i32_9 : i32
    scf.if %11 {
      %c0_10 = arith.constant 0 : index
      %c0_11 = arith.constant 0 : index
      %12 = vector.load %arg6[%c0_10, %c0_11] : memref<64x1xf32, #tpu.memory_space<vmem>>, vector<64x1xf32>
      %c0_12 = arith.constant 0 : index
      %c0_13 = arith.constant 0 : index
      %13 = memref.load %arg4[%c0_12, %c0_13] : memref<1x1xf32, #tpu.memory_space<smem>>
      %14 = vector.broadcast %13 : f32 to vector<64x1xf32>
      %15 = arith.addf %12, %14 : vector<64x1xf32>
      %c0_14 = arith.constant 0 : index
      %c0_15 = arith.constant 0 : index
      %16 = vector.load %arg5[%c0_14, %c0_15] : memref<64x1xf32, #tpu.memory_space<vmem>>, vector<64x1xf32>
      tpu.vector_store %arg5[%c0_14, %c0_15], %15 {strides = array<i32>} : memref<64x1xf32, #tpu.memory_space<vmem>>, vector<64x1xf32>,
    } else {
    }
    return
  }
  func.func @transform_0(%arg0: i32, %arg1: i32) -> (i32, i32) {
    %c0_i32 = arith.constant 0 : i32
    return %arg0, %arg1 : i32, i32
  }
  func.func @transform_1(%arg0: i32, %arg1: i32) -> (i32, i32) {
    %c0_i32 = arith.constant 0 : i32
    %c0_i32_0 = arith.constant 0 : i32
    return %arg1, %c0_i32 : i32, i32
  }
  func.func @transform_2(%arg0: i32, %arg1: i32) -> (i32, i32) {
    %c0_i32 = arith.constant 0 : i32
    %c0_i32_0 = arith.constant 0 : i32
    %c0_i32_1 = arith.constant 0 : i32
    return %c0_i32, %c0_i32_0 : i32, i32
  }
  func.func @transform_3(%arg0: i32, %arg1: i32) -> (i32, i32) {
    %c0_i32 = arith.constant 0 : i32
    %c0_i32_0 = arith.constant 0 : i32
    return %arg0, %c0_i32 : i32, i32
  }
}

</mosaic_0001>

<llo_original>
// kernel: lasso_forward.1
$region0: #{lasso_forward.1}
  #allocation0 [shape = 'u32[]', space=smem, size = 0x4, offset = 0x4, fixed_abs, tag = 'smem constant byte address 0x4 - core index']
  #allocation1 [shape = 'u32[144,128]{1,0:T(1,128)}', space=vmem, size = 0x12000, scoped, tag = 'internal scratch']
  #allocation2 [shape = 'f32[64,1]{1,0:T(8,128)}', space=vmem, size = 0x8000, scoped, tag = 'scratch operand']
  #allocation3 [shape = 'f32[1,1]{1,0:T(1,128)S(6)}', space=smem, size = 0x200, scoped, tag = 'scoped memory for lasso_forward.1']
  %s0 = inlined_call_operand.vmem [shape: f32[200,96], index: 0, kind: input, shape index: {}]
  %s1 = inlined_call_operand.vmem [shape: f32[96,1], index: 1, kind: input, shape index: {}]
  %s2 = inlined_call_operand.<no memory space> [shape: f32[1,1], index: 2, kind: input, shape index: {}]
  %s3 = inlined_call_operand.vmem [shape: f32[200,1], index: 3, kind: output, shape index: {}]
  %s4 = sld [smem:[#allocation0]]
  $region101: #{lasso_forward.1} parent=0
    _
  %s6 = ssub.s32 1, %s4
  %s7 = scalar_select 0, %s6, %s4
  %8 = sst [smem:[#allocation3]] %s2
  $region1: #{lasso_forward.1} parent=0
    #allocation4 [shape = 'u8[65536]{0}', space=vmem, size = 0x10000, scoped, tag = 'output window, operand 0']
    loop: start=0, step=1, limit=6
    $region2: #{lasso_forward.1} parent=1 // loop_pre_header
      _
    $region3: #{lasso_forward.1} parent=1 // loop_header
      %s10 = sphi 0, %s14
      %p11 = scmp.ge.s32.totalorder %s10, 6
      %s17 = sphi 0, %s29
      %s18 = sphi 0, %s25
      %s19 = sphi 0, %s17
      %s20 = sphi 0, %s18
      %s21 = sphi 0, %s19
      %s22 = sphi 0, %s20
      %s34 = sphi 0, %s36
      %s37 = sphi 0, %s34
      %s38 = sphi 0, %s37
      %s54 = sphi 0, %s38
      %s60 = sphi 0, %s62
      %s63 = sphi 0, %s60
      %s64 = sphi 0, %s63
      %s80 = sphi 0, %s64
      %s84 = sphi 0, %s84
      %s86 = sphi 0, %s84
      %s87 = sphi 0, %s86
      %s101 = sphi 0, %s87
      %s107 = sphi 0, %s109
      %s110 = sphi 0, %s107
      %s111 = sphi 0, %s110
      %s127 = sphi 0, %s111
    $region4: #{lasso_forward.1} parent=1 // loop_header_branch
      %13 = sbr.rel (%p11) target = $region8
    $region5: #{lasso_forward.1} parent=1 // loop_body
      %s15 = ssub.s32 %s10, 1
      %s16 = ssub.s32 %s10, 2
      %s23 = sadd.s32 1, %s18
      %p24 = scmp.ge.s32.totalorder %s23, 1
      %s25 = scalar_select %p24, 0, %s23
      %s26 = sadd.s32 1, %s17
      %s27 = scalar_select %p24, %s26, %s17
      %p28 = scmp.ge.s32.totalorder %s27, 4
      %s29 = scalar_select %p28, 0, %s27
      %s30 = ssub.s32 %s17, %s29
      %s31 = ssub.s32 %s18, %s25
      %s32 = sor.u32 %s30, %s31
      %p33 = scmp.eq.s32.totalorder %s32, 0
      %s35 = sadd.s32 %s34, 1
      %s36 = scalar_select %p33, %s34, %s35
      %p39 = pneg %p33
      %p40 = scmp.eq.s32.totalorder %s10, 3
      %p41 = por %p39, %p40
      %p42 = scmp.ne.s32.totalorder %s34, %s37
      %p43 = scmp.eq.s32.totalorder %s10, 0
      %p44 = por %p42, %p43
      %p45 = scmp.ne.s32.totalorder %s34, %s37
      %p46 = scmp.eq.s32.totalorder %s15, 3
      %p47 = por %p45, %p46
      %p48 = scmp.ne.s32.totalorder %s37, %s38
      %p49 = scmp.eq.s32.totalorder %s15, 0
      %p50 = por %p48, %p49
      %p51 = scmp.ne.s32.totalorder %s37, %s38
      %p52 = scmp.eq.s32.totalorder %s16, 3
      %p53 = por %p51, %p52
      %p55 = scmp.ne.s32.totalorder %s38, %s54
      %p56 = scmp.eq.s32.totalorder %s16, 0
      %p57 = por %p55, %p56
      %s58 = ssub.s32 %s18, %s25
      %p59 = scmp.eq.s32.totalorder %s58, 0
      %s61 = sadd.s32 %s60, 1
      %s62 = scalar_select %p59, %s60, %s61
      %p65 = pneg %p59
      %p66 = scmp.eq.s32.totalorder %s10, 3
      %p67 = por %p65, %p66
      %p68 = scmp.ne.s32.totalorder %s60, %s63
      %p69 = scmp.eq.s32.totalorder %s10, 0
      %p70 = por %p68, %p69
      %p71 = scmp.ne.s32.totalorder %s60, %s63
      %p72 = scmp.eq.s32.totalorder %s15, 3
      %p73 = por %p71, %p72
      %p74 = scmp.ne.s32.totalorder %s63, %s64
      %p75 = scmp.eq.s32.totalorder %s15, 0
      %p76 = por %p74, %p75
      %p77 = scmp.ne.s32.totalorder %s63, %s64
      %p78 = scmp.eq.s32.totalorder %s16, 3
      %p79 = por %p77, %p78
      %p81 = scmp.ne.s32.totalorder %s64, %s80
      %p82 = scmp.eq.s32.totalorder %s16, 0
      %p83 = por %p81, %p82
      %s85 = sadd.s32 %s84, 1
      %p88 = scmp.eq.s32.totalorder %s10, 3
      %p89 = scmp.ne.s32.totalorder %s84, %s86
      %p90 = scmp.eq.s32.totalorder %s10, 0
      %p91 = por %p89, %p90
      %p92 = scmp.ne.s32.totalorder %s84, %s86
      %p93 = scmp.eq.s32.totalorder %s15, 3
      %p94 = por %p92, %p93
      %p95 = scmp.ne.s32.totalorder %s86, %s87
      %p96 = scmp.eq.s32.totalorder %s15, 0
      %p97 = por %p95, %p96
      %p98 = scmp.ne.s32.totalorder %s86, %s87
      %p99 = scmp.eq.s32.totalorder %s16, 3
      %p100 = por %p98, %p99
      %p102 = scmp.ne.s32.totalorder %s87, %s101
      %p103 = scmp.eq.s32.totalorder %s16, 0
      %p104 = por %p102, %p103
      %s105 = ssub.s32 %s17, %s29
      %p106 = scmp.eq.s32.totalorder %s105, 0
      %s108 = sadd.s32 %s107, 1
      %s109 = scalar_select %p106, %s107, %s108
      %p112 = pneg %p106
      %p113 = scmp.eq.s32.totalorder %s10, 3
      %p114 = por %p112, %p113
      %p115 = scmp.ne.s32.totalorder %s107, %s110
      %p116 = scmp.eq.s32.totalorder %s10, 0
      %p117 = por %p115, %p116
      %p118 = scmp.ne.s32.totalorder %s107, %s110
      %p119 = scmp.eq.s32.totalorder %s15, 3
      %p120 = por %p118, %p119
      %p121 = scmp.ne.s32.totalorder %s110, %s111
      %p122 = scmp.eq.s32.totalorder %s15, 0
      %p123 = por %p121, %p122
      %p124 = scmp.ne.s32.totalorder %s110, %s111
      %p125 = scmp.eq.s32.totalorder %s16, 3
      %p126 = por %p124, %p125
      %p128 = scmp.ne.s32.totalorder %s111, %s127
      %p129 = scmp.eq.s32.totalorder %s16, 0
      %p130 = por %p128, %p129
      %p131 = scmp.le.s32.totalorder 1, %s10
      %p132 = scmp.lt.s32.totalorder %s10, 5
      %p133 = pnand %p131, %p132
      %p134 = pneg %p133
      // Predicated region
      $region9: #{lasso_forward.1} parent=5 // pred_check
        _
      $region10: #{lasso_forward.1} parent=5 // pred_check_branch
        %136 = sbr.rel (%p133) target = $region12
      $region11: #{lasso_forward.1} parent=5 // pred_region
        %s137 = ssub.s32 %s10, 1
        // Predicated region
        $region13: #{lasso_forward.1} parent=11 // pred_check
          %p138 = pneg %p76
        $region14: #{lasso_forward.1} parent=11 // pred_check_branch
          %140 = sbr.rel (%p138) target = $region16
        $region15: #{lasso_forward.1} parent=11 // pred_region
          %s141 = smul.u32 12, %s20
          %p142 = scmp.lt.s32.totalorder %s141, 11
          %s143 = scalar_select %p142, %s141, 11
          %s144 = smul.addr %s143, 8
          %s145 = scalar_lea.vmem %s1, %s144
          %s146 = smul.u32 12, %s20
        $region16: #{lasso_forward.1} parent=11 // pred_fallthru
          _
        // Predicated region
        $region17: #{lasso_forward.1} parent=11 // pred_check
          %p147 = pneg %p97
        $region18: #{lasso_forward.1} parent=11 // pred_check_branch
          %149 = sbr.rel (%p147) target = $region20
        $region19: #{lasso_forward.1} parent=11 // pred_region
          _
        $region20: #{lasso_forward.1} parent=11 // pred_fallthru
          _
      $region12: #{lasso_forward.1} parent=5 // pred_fallthru
        _
      %p150 = scmp.lt.s32.totalorder %s10, 4
      // Predicated region
      $region21: #{lasso_forward.1} parent=5 // pred_check
        %p151 = pneg %p150
      $region22: #{lasso_forward.1} parent=5 // pred_check_branch
        %153 = sbr.rel (%p151) target = $region24
      $region23: #{lasso_forward.1} parent=5 // pred_region
        // Predicated region
        $region25: #{lasso_forward.1} parent=23 // pred_check
          %p154 = pneg %p44
        $region26: #{lasso_forward.1} parent=23 // pred_check_branch
          %156 = sbr.rel (%p154) target = $region28
        $region27: #{lasso_forward.1} parent=23 // pred_region
          %s157 = smul.u32 8, %s17
          %s158 = ssub.s32 25, %s157
          %p159 = scmp.lt.s32.totalorder %s158, 8
          %s160 = scalar_select %p159, %s158, 8
          %s161 = smul.u32 128, %s160
          %p162 = scmp.lt.s32.totalorder %s157, 24
          %s163 = scalar_select %p162, %s157, 24
          %p164 = scmp.lt.s32.totalorder %s18, 0
          %s165 = scalar_select %p164, %s18, 0
          %s166 = sadd.s32 %s165, %s163
          %s167 = smul.addr %s166, 8
          %s168 = scalar_lea.vmem %s0, %s167
          %s169 = smul.u32 8, %s17
          %s170 = ssub.s32 25, %s169
          %p171 = scmp.lt.s32.totalorder %s170, 8
          %s172 = scalar_select %p171, %s170, 8
          %s173 = smul.u32 128, %s172
        $region28: #{lasso_forward.1} parent=23 // pred_fallthru
          _
      $region24: #{lasso_forward.1} parent=5 // pred_fallthru
        _
      %p174 = scmp.le.s32.totalorder 1, %s10
      %p175 = scmp.lt.s32.totalorder %s10, 5
      %p176 = pnand %p174, %p175
      %p177 = pneg %p176
      // Predicated region
      $region29: #{lasso_forward.1} parent=5 // pred_check
        _
      $region30: #{lasso_forward.1} parent=5 // pred_check_branch
        %179 = sbr.rel (%p176) target = $region32
      $region31: #{lasso_forward.1} parent=5 // pred_region
        %s180 = ssub.s32 %s10, 1
        %s181 = smul.u32 8, %s19
        %s182 = ssub.s32 25, %s181
        %p183 = scmp.lt.s32.totalorder %s182, 8
        %s184 = scalar_select %p183, %s182, 8
        %s185 = smul.u32 128, %s184
        %p186 = scmp.lt.s32.totalorder %s181, 24
        %s187 = scalar_select %p186, %s181, 24
        %p188 = scmp.lt.s32.totalorder %s20, 0
        %s189 = scalar_select %p188, %s20, 0
        %s190 = sadd.s32 %s189, %s187
        %s191 = smul.addr %s190, 8
        %s192 = scalar_lea.vmem %s0, %s191
        %p193 = pneg %p50
        %p194 = pneg %p47
        %s195 = smul.u32 12, %s20
        %p196 = scmp.lt.s32.totalorder %s195, 11
        %s197 = scalar_select %p196, %s195, 11
        %s198 = smul.addr %s197, 8
        %s199 = scalar_lea.vmem %s1, %s198
        %p200 = pneg %p76
        %p201 = pneg %p73
        %p202 = pneg %p97
        %p203 = pneg %p94
        %p204 = pneg %p123
        %p205 = pneg %p120
        %s206 = sand.u32 %s110, 1
        %s207 = sand.u32 %s110, 1
        %s208 = smul.addr %s207, 64
        %s209 = scalar_lea.vmem [#allocation4], %s208
        %s210 = smul.u32 8, %s19
        %s211 = ssub.s32 25, %s210
        %p212 = scmp.lt.s32.totalorder %s211, 8
        %s213 = scalar_select %p212, %s211, 8
        %s214 = smul.u32 128, %s213
        %p215 = scmp.lt.s32.totalorder %s210, 24
        %s216 = scalar_select %p215, %s210, 24
        %p217 = scmp.lt.s32.totalorder %s20, 0
        %s218 = scalar_select %p217, %s20, 0
        %s219 = sadd.s32 %s218, %s216
        %s220 = smul.addr %s219, 8
        %s221 = scalar_lea.vmem %s0, %s220
        %s222 = smul.u32 8, %s19
        %s223 = ssub.s32 25, %s222
        %p224 = scmp.lt.s32.totalorder %s223, 8
        %s225 = scalar_select %p224, %s223, 8
        %s226 = smul.u32 128, %s225
        %s227 = smul.u32 12, %s20
        %p228 = scmp.lt.s32.totalorder %s227, 11
        %s229 = scalar_select %p228, %s227, 11
        %s230 = smul.addr %s229, 8
        %s231 = scalar_lea.vmem %s1, %s230
        %s232 = smul.u32 12, %s20
        %s233 = smul.u32 8, %s19
        %s234 = ssub.s32 25, %s233
        %p235 = scmp.lt.s32.totalorder %s234, 8
        %s236 = scalar_select %p235, %s234, 8
        %s237 = smul.u32 128, %s236
        %p238 = scmp.eq.s32.totalorder %s20, 0
        // Predicated region
        $region33: #{lasso_forward.1} parent=31 // pred_check
          %p239 = pneg %p238
        $region34: #{lasso_forward.1} parent=31 // pred_check_branch
          %241 = sbr.rel (%p239) target = $region36
        $region35: #{lasso_forward.1} parent=31 // pred_region
          %vm242 = vcmask 7168
          %243 = vst.msk [vmem:[#allocation2] sm:$0xff] %vm242, 0.0
          %244 = vst.msk [vmem:[#allocation2 + $0x8] sm:$0xff] %vm242, 0.0
          %245 = vst.msk [vmem:[#allocation2 + $0x10] sm:$0xff] %vm242, 0.0
          %246 = vst.msk [vmem:[#allocation2 + $0x18] sm:$0xff] %vm242, 0.0
          %247 = vst.msk [vmem:[#allocation2 + $0x20] sm:$0xff] %vm242, 0.0
          %248 = vst.msk [vmem:[#allocation2 + $0x28] sm:$0xff] %vm242, 0.0
          %249 = vst.msk [vmem:[#allocation2 + $0x30] sm:$0xff] %vm242, 0.0
          %250 = vst.msk [vmem:[#allocation2 + $0x38] sm:$0xff] %vm242, 0.0
        $region36: #{lasso_forward.1} parent=31 // pred_fallthru
          _
        %v251 = vld [vmem:[%s221] sm:$0xff]
        %v252 = vld [vmem:[%s221 + $0x8] sm:$0xff]
        %v253 = vld [vmem:[%s221 + $0x10] sm:$0xff]
        %v254 = vld [vmem:[%s221 + $0x18] sm:$0xff]
        %v255 = vld [vmem:[%s221 + $0x20] sm:$0xff]
        %v256 = vld [vmem:[%s221 + $0x28] sm:$0xff]
        %v257 = vld [vmem:[%s221 + $0x30] sm:$0xff]
        %v258 = vld [vmem:[%s221 + $0x38] sm:$0xff]
        %v259 = vld [vmem:[%s231] sm:$0xff]
        %v260 = vld [vmem:[%s231 + $0x8] sm:$0xff]
        %v261 = vld [vmem:[%s231 + $0x10] sm:$0xff]
        %v262 = vld [vmem:[%s231 + $0x18] sm:$0xff]
        %v263 = vld [vmem:[%s231 + $0x20] sm:$0xff]
        %v264 = vld [vmem:[%s231 + $0x28] sm:$0xff]
        %v265 = vld [vmem:[%s231 + $0x30] sm:$0xff]
        %v266 = vld [vmem:[%s231 + $0x38] sm:$0xff]
        %v267 = vld [vmem:[%s231 + $0x40] sm:$0xff]
        %v268 = vld [vmem:[%s231 + $0x48] sm:$0xff]
        %v269 = vld [vmem:[%s231 + $0x50] sm:$0xff]
        %v270 = vld [vmem:[%s231 + $0x58] sm:$0xff]
        %v271 = vld [vmem:[#allocation2] sm:$0xff]
        %v272 = vld [vmem:[#allocation2 + $0x8] sm:$0xff]
        %v273 = vld [vmem:[#allocation2 + $0x10] sm:$0xff]
        %v274 = vld [vmem:[#allocation2 + $0x18] sm:$0xff]
        %v275 = vld [vmem:[#allocation2 + $0x20] sm:$0xff]
        %v276 = vld [vmem:[#allocation2 + $0x28] sm:$0xff]
        %v277 = vld [vmem:[#allocation2 + $0x30] sm:$0xff]
        %v278 = vld [vmem:[#allocation2 + $0x38] sm:$0xff]
        %vm279 = vcmask 785408
        %v281 = vsel %vm279, %v251, 0
        %v284 = vsel %vm279, %v252, 0
        %v287 = vsel %vm279, %v253, 0
        %v290 = vsel %vm279, %v254, 0
        %v293 = vsel %vm279, %v255, 0
        %v296 = vsel %vm279, %v256, 0
        %v299 = vsel %vm279, %v257, 0
        %v302 = vsel %vm279, %v258, 0
        %304 = vmatprep.subr.mxu0 0.0
        %305 = vmatpush1.msra.mxu0 %v259
        %306 = vmatprep.subr.mxu0 0.0
        %307 = vmatpush1.msra.mxu0 %v260
        %308 = vmatprep.subr.mxu0 0.0
        %309 = vmatpush1.msra.mxu0 %v261
        %310 = vmatprep.subr.mxu0 0.0
        %311 = vmatpush1.msra.mxu0 %v262
        %312 = vmatprep.subr.mxu0 0.0
        %313 = vmatpush1.msra.mxu0 %v263
        %314 = vmatprep.subr.mxu0 0.0
        %315 = vmatpush1.msra.mxu0 %v264
        %316 = vmatprep.subr.mxu0 0.0
        %317 = vmatpush1.msra.mxu0 %v265
        %318 = vmatprep.subr.mxu0 0.0
        %319 = vmatpush1.msra.mxu0 %v266
        %320 = vmatprep.subr.mxu0 0.0
        %321 = vmatpush1.msra.mxu0 %v267
        %322 = vmatprep.subr.mxu0 0.0
        %323 = vmatpush1.msra.mxu0 %v268
        %324 = vmatprep.subr.mxu0 0.0
        %325 = vmatpush1.msra.mxu0 %v269
        %326 = vmatprep.subr.mxu0 0.0
        %327 = vmatpush1.msra.mxu0 %v270
        %328 = vmatprep.subr.mxu0 0.0
        %329 = vmatpush1.msra.mxu0 0.0
        %330 = vmatprep.subr.mxu0 0.0
        %331 = vmatpush1.msra.mxu0 0.0
        %332 = vmatprep.subr.mxu0 0.0
        %333 = vmatpush1.msra.mxu0 0.0
        %334 = vmatprep.subr.mxu0 0.0
        %335 = vmatpush1.msra.mxu0 0.0
        %336 = vmatprep.subr.mxu0 0.0
        %337 = vmatpush1.msra.mxu0 0.0
        %338 = vmatprep.subr.mxu0 0.0
        %339 = vmatpush1.msra.mxu0 0.0
        %340 = vmatprep.subr.mxu0 0.0
        %341 = vmatpush1.msra.mxu0 0.0
        %342 = vmatprep.subr.mxu0 0.0
        %343 = vmatpush1.msra.mxu0 0.0
        %344 = vmatprep.subr.mxu0 0.0
        %345 = vmatpush1.msra.mxu0 0.0
        %346 = vmatprep.subr.mxu0 0.0
        %347 = vmatpush1.msra.mxu0 0.0
        %348 = vmatprep.subr.mxu0 0.0
        %349 = vmatpush1.msra.mxu0 0.0
        %350 = vmatprep.subr.mxu0 0.0
        %351 = vmatpush1.msra.mxu0 0.0
        %352 = vmatprep.subr.mxu0 0.0
        %353 = vmatpush1.msra.mxu0 0.0
        %354 = vmatprep.subr.mxu0 0.0
        %355 = vmatpush1.msra.mxu0 0.0
        %356 = vmatprep.subr.mxu0 0.0
        %357 = vmatpush1.msra.mxu0 0.0
        %358 = vmatprep.subr.mxu0 0.0
        %359 = vmatpush1.msra.mxu0 0.0
        %360 = vmatprep.subr.mxu0 0.0
        %361 = vmatpush1.msra.mxu0 0.0
        %362 = vmatprep.subr.mxu0 0.0
        %363 = vmatpush1.msra.mxu0 0.0
        %364 = vmatprep.subr.mxu0 0.0
        %365 = vmatpush1.msra.mxu0 0.0
        %366 = vmatprep.subr.mxu0 0.0
        %367 = vmatpush1.msra.mxu0 0.0
        %368 = vmatprep.mubr.f32.mxu0 0.0
        %369 = vmatmul.mubr.f32.gmra.mrb[0].mxu0 %v281
        %v370 = vpop.f32.mrb[0].mxu0
        %v371 = vadd.f32 0.0, %v370
        %v372 = vpop.f32.mrb[0].mxu0
        %373 = vmatprep.mubr.f32.mxu0 0.0
        %374 = vmatmul.mubr.f32.gmra.mrb[0].mxu0 %v284
        %v375 = vpop.f32.mrb[0].mxu0
        %v376 = vadd.f32 0.0, %v375
        %v377 = vpop.f32.mrb[0].mxu0
        %378 = vmatprep.mubr.f32.mxu0 0.0
        %379 = vmatmul.mubr.f32.gmra.mrb[0].mxu0 %v287
        %v380 = vpop.f32.mrb[0].mxu0
        %v381 = vadd.f32 0.0, %v380
        %v382 = vpop.f32.mrb[0].mxu0
        %383 = vmatprep.mubr.f32.mxu0 0.0
        %384 = vmatmul.mubr.f32.gmra.mrb[0].mxu0 %v290
        %v385 = vpop.f32.mrb[0].mxu0
        %v386 = vadd.f32 0.0, %v385
        %v387 = vpop.f32.mrb[0].mxu0
        %388 = vmatprep.mubr.f32.mxu0 0.0
        %389 = vmatmul.mubr.f32.gmra.mrb[0].mxu0 %v293
        %v390 = vpop.f32.mrb[0].mxu0
        %v391 = vadd.f32 0.0, %v390
        %v392 = vpop.f32.mrb[0].mxu0
        %393 = vmatprep.mubr.f32.mxu0 0.0
        %394 = vmatmul.mubr.f32.gmra.mrb[0].mxu0 %v296
        %v395 = vpop.f32.mrb[0].mxu0
        %v396 = vadd.f32 0.0, %v395
        %v397 = vpop.f32.mrb[0].mxu0
        %398 = vmatprep.mubr.f32.mxu0 0.0
        %399 = vmatmul.mubr.f32.gmra.mrb[0].mxu0 %v299
        %v400 = vpop.f32.mrb[0].mxu0
        %v401 = vadd.f32 0.0, %v400
        %v402 = vpop.f32.mrb[0].mxu0
        %403 = vmatprep.mubr.f32.mxu0 0.0
        %404 = vmatmul.mubr.f32.gmra.mrb[0].mxu0 %v302
        %v405 = vpop.f32.mrb[0].mxu0
        %v406 = vadd.f32 0.0, %v405
        %v407 = vpop.f32.mrb[0].mxu0
        %408 = vdwg.mxu0
        %v409 = vadd.f32 %v271, %v371
        %v410 = vadd.f32 %v272, %v376
        %v411 = vadd.f32 %v273, %v381
        %v412 = vadd.f32 %v274, %v386
        %v413 = vadd.f32 %v275, %v391
        %v414 = vadd.f32 %v276, %v396
        %v415 = vadd.f32 %v277, %v401
        %v416 = vadd.f32 %v278, %v406
        %vm417 = vcmask 7168
        %418 = vst.msk [vmem:[#allocation2] sm:$0xff] %vm417, %v409
        %419 = vst.msk [vmem:[#allocation2 + $0x8] sm:$0xff] %vm417, %v410
        %420 = vst.msk [vmem:[#allocation2 + $0x10] sm:$0xff] %vm417, %v411
        %421 = vst.msk [vmem:[#allocation2 + $0x18] sm:$0xff] %vm417, %v412
        %422 = vst.msk [vmem:[#allocation2 + $0x20] sm:$0xff] %vm417, %v413
        %423 = vst.msk [vmem:[#allocation2 + $0x28] sm:$0xff] %vm417, %v414
        %424 = vst.msk [vmem:[#allocation2 + $0x30] sm:$0xff] %vm417, %v415
        %425 = vst.msk [vmem:[#allocation2 + $0x38] sm:$0xff] %vm417, %v416
        // Predicated region
        $region37: #{lasso_forward.1} parent=31 // pred_check
          %p426 = pneg %p238
        $region38: #{lasso_forward.1} parent=31 // pred_check_branch
          %428 = sbr.rel (%p426) target = $region40
        $region39: #{lasso_forward.1} parent=31 // pred_region
          %v429 = vld [vmem:[#allocation2] sm:$0xff]
          %v430 = vld [vmem:[#allocation2 + $0x8] sm:$0xff]
          %v431 = vld [vmem:[#allocation2 + $0x10] sm:$0xff]
          %v432 = vld [vmem:[#allocation2 + $0x18] sm:$0xff]
          %v433 = vld [vmem:[#allocation2 + $0x20] sm:$0xff]
          %v434 = vld [vmem:[#allocation2 + $0x28] sm:$0xff]
          %v435 = vld [vmem:[#allocation2 + $0x30] sm:$0xff]
          %v436 = vld [vmem:[#allocation2 + $0x38] sm:$0xff]
          %s437 = sld [smem:[#allocation3]]
          %v438 = vstv %s437
          %v439 = vadd.f32 %v429, %v438
          %v440 = vadd.f32 %v430, %v438
          %v441 = vadd.f32 %v431, %v438
          %v442 = vadd.f32 %v432, %v438
          %v443 = vadd.f32 %v433, %v438
          %v444 = vadd.f32 %v434, %v438
          %v445 = vadd.f32 %v435, %v438
          %v446 = vadd.f32 %v436, %v438
          %447 = vst.msk [vmem:[%s209] sm:$0xff] %vm417, %v439
          %448 = vst.msk [vmem:[%s209 + $0x8] sm:$0xff] %vm417, %v440
          %449 = vst.msk [vmem:[%s209 + $0x10] sm:$0xff] %vm417, %v441
          %450 = vst.msk [vmem:[%s209 + $0x18] sm:$0xff] %vm417, %v442
          %451 = vst.msk [vmem:[%s209 + $0x20] sm:$0xff] %vm417, %v443
          %452 = vst.msk [vmem:[%s209 + $0x28] sm:$0xff] %vm417, %v444
          %453 = vst.msk [vmem:[%s209 + $0x30] sm:$0xff] %vm417, %v445
          %454 = vst.msk [vmem:[%s209 + $0x38] sm:$0xff] %vm417, %v446
        $region40: #{lasso_forward.1} parent=31 // pred_fallthru
          _
        %s455 = sand.u32 %s110, 1
        %s456 = sand.u32 %s110, 1
        %s457 = smul.addr %s456, 64
        %s458 = scalar_lea.vmem [#allocation4], %s457
        // Predicated region
        $region41: #{lasso_forward.1} parent=31 // pred_check
          %p459 = pneg %p120
        $region42: #{lasso_forward.1} parent=31 // pred_check_branch
          %461 = sbr.rel (%p459) target = $region44
        $region43: #{lasso_forward.1} parent=31 // pred_region
          %s462 = smul.u32 8, %s19
          %s463 = ssub.s32 25, %s462
          %p464 = scmp.lt.s32.totalorder %s463, 8
          %s465 = scalar_select %p464, %s463, 8
          %s466 = smul.u32 128, %s465
          %p467 = scmp.ne.s32.totalorder 0, %s466
          %s468 = smul.addr %s462, 8
          %s469 = scalar_lea.vmem %s3, %s468
          // Predicated region
          $region45: #{lasso_forward.1} parent=43 // pred_check
            %p470 = pneg %p467
          $region46: #{lasso_forward.1} parent=43 // pred_check_branch
            %472 = sbr.rel (%p470) target = $region48
          $region47: #{lasso_forward.1} parent=43 // pred_region
            // Predicated region
            $region49: #{lasso_forward.1} parent=47 // pred_check
              _
            $region50: #{lasso_forward.1} parent=47 // pred_check_branch
              %474 = sbr.rel (0) target = $region52
            $region51: #{lasso_forward.1} parent=47 // pred_region
              // Predicated region
              $region71: #{lasso_forward.1} parent=51 // pred_check
                _
              $region72: #{lasso_forward.1} parent=51 // pred_check_branch
                %537 = sbr.rel (0) target = $region74
              $region73: #{lasso_forward.1} parent=51 // pred_region
                %s538 = sshrl.u32 %s465, 3
                // While loop
                $region75: #{lasso_forward.1} parent=73 // loop_pre_header
                  _
                $region76: #{lasso_forward.1} parent=73 // loop_header
                  %s540 = sphi 0, %s542
                  %p541 = scmp.ge.s32.totalorder %s540, %s538
                  %s545 = sphi 0, %s566
                  %s546 = sphi %s458, %s569
                  %s547 = sphi %s469, %s570
                $region77: #{lasso_forward.1} parent=73 // loop_header_branch
                  %544 = sbr.rel (%p541) target = $region81
                $region78: #{lasso_forward.1} parent=73 // loop_body
                  %v548 = vld [vmem:[%s546] sm:$0xff]
                  %549 = vst [vmem:[%s547] sm:$0xff] %v548
                  %v550 = vld [vmem:[%s546 + $0x8] sm:$0xff]
                  %551 = vst [vmem:[%s547 + $0x8] sm:$0xff] %v550
                  %v552 = vld [vmem:[%s546 + $0x10] sm:$0xff]
                  %553 = vst [vmem:[%s547 + $0x10] sm:$0xff] %v552
                  %v554 = vld [vmem:[%s546 + $0x18] sm:$0xff]
                  %555 = vst [vmem:[%s547 + $0x18] sm:$0xff] %v554
                  %v556 = vld [vmem:[%s546 + $0x20] sm:$0xff]
                  %557 = vst [vmem:[%s547 + $0x20] sm:$0xff] %v556
                  %v558 = vld [vmem:[%s546 + $0x28] sm:$0xff]
                  %559 = vst [vmem:[%s547 + $0x28] sm:$0xff] %v558
                  %v560 = vld [vmem:[%s546 + $0x30] sm:$0xff]
                  %561 = vst [vmem:[%s547 + $0x30] sm:$0xff] %v560
                  %v562 = vld [vmem:[%s546 + $0x38] sm:$0xff]
                  %563 = vst [vmem:[%s547 + $0x38] sm:$0xff] %v562
                  %s564 = sadd.s32 1, %s545
                  %p565 = scmp.ge.s32.totalorder %s564, %s538
                  %s566 = scalar_select %p565, 0, %s564
                  %s567 = smul.u32 %s566, 64
                  %s568 = smul.u32 %s566, 64
                  %s569 = scalar_lea.vmem %s458, %s567 [#allocation4]
                  %s570 = scalar_lea.vmem %s469, %s568
                $region79: #{lasso_forward.1} parent=73 // loop_footer
                  %s542 = sadd.s32 %s540, 1
                $region80: #{lasso_forward.1} parent=73 // loop_footer_branch
                  %539 = sbr.rel target = $region76
                $region81: #{lasso_forward.1} parent=73 // loop_exit
                  _
                %s571 = sshrl.u32 %s465, 3
                %s572 = sand.u32 %s465, 7
                %s573 = smul.u32 %s571, 8
                %s574 = smul.u32 8, %s573
                %s575 = scalar_lea.vmem %s458, %s574 [#allocation4]
                %s576 = smul.u32 8, %s573
                %s577 = scalar_lea.vmem %s469, %s576
                // While loop
                $region82: #{lasso_forward.1} parent=73 // loop_pre_header
                  _
                $region83: #{lasso_forward.1} parent=73 // loop_header
                  %s579 = sphi 0, %s581
                  %p580 = scmp.ge.s32.totalorder %s579, %s572
                  %s584 = sphi 0, %s591
                  %s585 = sphi %s575, %s594
                  %s586 = sphi %s577, %s595
                $region84: #{lasso_forward.1} parent=73 // loop_header_branch
                  %583 = sbr.rel (%p580) target = $region88
                $region85: #{lasso_forward.1} parent=73 // loop_body
                  %v587 = vld [vmem:[%s585] sm:$0xff]
                  %588 = vst [vmem:[%s586] sm:$0xff] %v587
                  %s589 = sadd.s32 1, %s584
                  %p590 = scmp.ge.s32.totalorder %s589, %s572
                  %s591 = scalar_select %p590, 0, %s589
                  %s592 = smul.u32 %s591, 8
                  %s593 = smul.u32 %s591, 8
                  %s594 = scalar_lea.vmem %s575, %s592 [#allocation4]
                  %s595 = scalar_lea.vmem %s577, %s593
                $region86: #{lasso_forward.1} parent=73 // loop_footer
                  %s581 = sadd.s32 %s579, 1
                $region87: #{lasso_forward.1} parent=73 // loop_footer_branch
                  %578 = sbr.rel target = $region83
                $region88: #{lasso_forward.1} parent=73 // loop_exit
                  _
              $region74: #{lasso_forward.1} parent=51 // pred_fallthru
                _
              // Predicated region
              $region89: #{lasso_forward.1} parent=51 // pred_check
                _
              $region90: #{lasso_forward.1} parent=51 // pred_check_branch
                %597 = sbr.rel target = $region92
              $region91: #{lasso_forward.1} parent=51 // pred_region
                _
              $region92: #{lasso_forward.1} parent=51 // pred_fallthru
                _
            $region52: #{lasso_forward.1} parent=47 // pred_fallthru
              _
            // Predicated region
            $region53: #{lasso_forward.1} parent=47 // pred_check
              _
            $region54: #{lasso_forward.1} parent=47 // pred_check_branch
              %476 = sbr.rel target = $region56
            $region55: #{lasso_forward.1} parent=47 // pred_region
              %s478 = sshrl.u32 %s465, 3
              // While loop
              $region57: #{lasso_forward.1} parent=55 // loop_pre_header
                _
              $region58: #{lasso_forward.1} parent=55 // loop_header
                %s480 = sphi 0, %s482
                %p481 = scmp.ge.s32.totalorder %s480, %s478
                %s485 = sphi 0, %s506
                %s486 = sphi %s458, %s509
                %s487 = sphi %s469, %s510
              $region59: #{lasso_forward.1} parent=55 // loop_header_branch
                %484 = sbr.rel (%p481) target = $region63
              $region60: #{lasso_forward.1} parent=55 // loop_body
                %v488 = vld [vmem:[%s486] sm:$0xff]
                %489 = vst [vmem:[%s487] sm:$0xff] %v488
                %v490 = vld [vmem:[%s486 + $0x8] sm:$0xff]
                %491 = vst [vmem:[%s487 + $0x8] sm:$0xff] %v490
                %v492 = vld [vmem:[%s486 + $0x10] sm:$0xff]
                %493 = vst [vmem:[%s487 + $0x10] sm:$0xff] %v492
                %v494 = vld [vmem:[%s486 + $0x18] sm:$0xff]
                %495 = vst [vmem:[%s487 + $0x18] sm:$0xff] %v494
                %v496 = vld [vmem:[%s486 + $0x20] sm:$0xff]
                %497 = vst [vmem:[%s487 + $0x20] sm:$0xff] %v496
                %v498 = vld [vmem:[%s486 + $0x28] sm:$0xff]
                %499 = vst [vmem:[%s487 + $0x28] sm:$0xff] %v498
                %v500 = vld [vmem:[%s486 + $0x30] sm:$0xff]
                %501 = vst [vmem:[%s487 + $0x30] sm:$0xff] %v500
                %v502 = vld [vmem:[%s486 + $0x38] sm:$0xff]
                %503 = vst [vmem:[%s487 + $0x38] sm:$0xff] %v502
                %s504 = sadd.s32 1, %s485
                %p505 = scmp.ge.s32.totalorder %s504, %s478
                %s506 = scalar_select %p505, 0, %s504
                %s507 = smul.u32 %s506, 64
                %s508 = smul.u32 %s506, 64
                %s509 = scalar_lea.vmem %s458, %s507 [#allocation4]
                %s510 = scalar_lea.vmem %s469, %s508
              $region61: #{lasso_forward.1} parent=55 // loop_footer
                %s482 = sadd.s32 %s480, 1
              $region62: #{lasso_forward.1} parent=55 // loop_footer_branch
                %479 = sbr.rel target = $region58
              $region63: #{lasso_forward.1} parent=55 // loop_exit
                _
              %s511 = sshrl.u32 %s465, 3
              %s512 = sand.u32 %s465, 7
              %s513 = smul.u32 %s511, 8
              %s514 = smul.u32 8, %s513
              %s515 = scalar_lea.vmem %s458, %s514 [#allocation4]
              %s516 = smul.u32 8, %s513
              %s517 = scalar_lea.vmem %s469, %s516
              // While loop
              $region64: #{lasso_forward.1} parent=55 // loop_pre_header
                _
              $region65: #{lasso_forward.1} parent=55 // loop_header
                %s519 = sphi 0, %s521
                %p520 = scmp.ge.s32.totalorder %s519, %s512
                %s524 = sphi 0, %s531
                %s525 = sphi %s515, %s534
                %s526 = sphi %s517, %s535
              $region66: #{lasso_forward.1} parent=55 // loop_header_branch
                %523 = sbr.rel (%p520) target = $region70
              $region67: #{lasso_forward.1} parent=55 // loop_body
                %v527 = vld [vmem:[%s525] sm:$0xff]
                %528 = vst [vmem:[%s526] sm:$0xff] %v527
                %s529 = sadd.s32 1, %s524
                %p530 = scmp.ge.s32.totalorder %s529, %s512
                %s531 = scalar_select %p530, 0, %s529
                %s532 = smul.u32 %s531, 8
                %s533 = smul.u32 %s531, 8
                %s534 = scalar_lea.vmem %s515, %s532 [#allocation4]
                %s535 = scalar_lea.vmem %s517, %s533
              $region68: #{lasso_forward.1} parent=55 // loop_footer
                %s521 = sadd.s32 %s519, 1
              $region69: #{lasso_forward.1} parent=55 // loop_footer_branch
                %518 = sbr.rel target = $region65
              $region70: #{lasso_forward.1} parent=55 // loop_exit
                _
            $region56: #{lasso_forward.1} parent=47 // pred_fallthru
              _
          $region48: #{lasso_forward.1} parent=43 // pred_fallthru
            _
          %598 = vnop
        $region44: #{lasso_forward.1} parent=31 // pred_fallthru
          _
      $region32: #{lasso_forward.1} parent=5 // pred_fallthru
        _
      %p599 = scmp.le.s32.totalorder 2, %s10
      // Predicated region
      $region93: #{lasso_forward.1} parent=5 // pred_check
        %p600 = pneg %p599
      $region94: #{lasso_forward.1} parent=5 // pred_check_branch
        %602 = sbr.rel (%p600) target = $region96
      $region95: #{lasso_forward.1} parent=5 // pred_region
        %s603 = ssub.s32 %s10, 2
        // Predicated region
        $region97: #{lasso_forward.1} parent=95 // pred_check
          %p604 = pneg %p126
        $region98: #{lasso_forward.1} parent=95 // pred_check_branch
          %606 = sbr.rel (%p604) target = $region100
        $region99: #{lasso_forward.1} parent=95 // pred_region
          %s607 = sand.u32 %s111, 1
          %s608 = sand.u32 %s111, 1
          %s609 = smul.addr %s608, 64
          %s610 = scalar_lea.vmem [#allocation4], %s609
        $region100: #{lasso_forward.1} parent=95 // pred_fallthru
          _
      $region96: #{lasso_forward.1} parent=5 // pred_fallthru
        _
    $region6: #{lasso_forward.1} parent=1 // loop_footer
      %s14 = sadd.s32 1, %s10
    $region7: #{lasso_forward.1} parent=1 // loop_footer_branch
      %9 = sbr.rel target = $region3
    $region8: #{lasso_forward.1} parent=1 // loop_exit
      _

</llo_original>
